<compile_context>
chip_gen: v7x
topology: tpu7x:2x2x1
jax: 0.10.0
libtpu: 0.0.40
codegen_flags: <defaults>
</compile_context>

<pallas_src>
import functools

import jax
import jax.numpy as jnp
from jax.experimental import pallas as pl
from jax.experimental.pallas import tpu as pltpu


def _round_up(a: int, m: int) -> int:
    return ((a + m - 1) // m) * m


def _gaussian_rbf_kernel(neg_gamma_ref, xh_ref, xl_ref, yh_ref, yl_ref,
                         x2_ref, y2_ref, o_ref, *scratch, n_sigma, num_k):
    # neg_gamma_ref: [n_sigma] SMEM scalars
    # xh_ref/xl_ref: [TM, TK] bf16 VMEM (hi/lo split of x)
    # yh_ref/yl_ref: [TK, TN] bf16 VMEM (hi/lo split of y, pre-transposed)
    # x2_ref: [TM, 1] f32, y2_ref: [1, TN] f32
    # o_ref: [TM, TN] f32 output tile
    # scratch: ([TM, TN] f32 accumulator,) only when num_k > 1
    k = pl.program_id(2)
    dims = (((1,), (0,)), ((), ()))

    # bf16x3 product on the MXU: hi.hi + hi.lo + lo.hi, f32 accumulation.
    mm = jax.lax.dot_general(xh_ref[...], yh_ref[...], dims,
                             preferred_element_type=jnp.float32)
    mm = mm + jax.lax.dot_general(xh_ref[...], yl_ref[...], dims,
                                  preferred_element_type=jnp.float32)
    mm = mm + jax.lax.dot_general(xl_ref[...], yh_ref[...], dims,
                                  preferred_element_type=jnp.float32)

    def epilogue(xy):
        dist = jnp.maximum(x2_ref[...] + y2_ref[...] - 2.0 * xy, 1e-30)
        acc = jnp.exp(neg_gamma_ref[0] * dist)
        for s in range(1, n_sigma):       # n_sigma is small & static: unroll
            acc = acc + jnp.exp(neg_gamma_ref[s] * dist)
        o_ref[...] = (acc * (1.0 / n_sigma)).astype(o_ref.dtype)

    if num_k == 1:
        # Single K step: no accumulator scratch, no round-trip at all.
        epilogue(mm)
    else:
        acc_ref = scratch[0]

        @pl.when(k == 0)
        def _():
            acc_ref[...] = mm            # store, no zero-init read-modify-write

        @pl.when(jnp.logical_and(k > 0, k < num_k - 1))
        def _():
            acc_ref[...] += mm

        @pl.when(k == num_k - 1)
        def _():
            epilogue(acc_ref[...] + mm)  # read only; no final write-back


def gaussian_rbf(x, y, sigma, *, tm_max=512, tn_max=1024, tk_max=512):
    """x: [N, C, H, W] (or [N, F]); y likewise; sigma: [n_sigma] -> [Nx, Ny]."""
    # glue: flatten NCHW -> [N, F] (matches torch's x.flatten(1))
    xf = x.reshape(x.shape[0], -1).astype(jnp.float32)
    yf = y.reshape(y.shape[0], -1).astype(jnp.float32)
    sigma = jnp.asarray(sigma, jnp.float32).reshape(-1)
    neg_gamma = -1.0 / (2.0 * sigma ** 2)                    # [n_sigma]
    n_sigma = int(neg_gamma.shape[0])

    nx, f = xf.shape
    ny, _ = yf.shape

    # Row norms hoisted out of the tile loop; computed in full f32 precision.
    x2 = jnp.sum(xf * xf, axis=-1, keepdims=True)            # [nx, 1]
    y2 = jnp.sum(yf * yf, axis=-1, keepdims=True).T          # [1, ny]

    # MXU-aligned, lane-dense tiles; adapt down for small shapes.
    # tm is a multiple of 16 (bf16 sublane packing), tn/tk multiples of 128.
    # Double-buffered working set at full tiles (bf16 hi/lo operands, f32 out):
    # ~12 MiB << the 32 MiB scoped limit (safe on v5e/v6e/v7x).
    tm = min(tm_max, _round_up(nx, 16))
    tn = min(tn_max, _round_up(ny, 128))
    tk = min(tk_max, _round_up(f, 128))
    nx_p = _round_up(nx, tm)
    ny_p = _round_up(ny, tn)
    f_p = _round_up(f, tk)

    # Zero-pad to tile multiples (zeros leave dot products / norms unchanged;
    # padded rows/cols are sliced off at the end).
    xf = jnp.pad(xf, ((0, nx_p - nx), (0, f_p - f)))
    yf = jnp.pad(yf, ((0, ny_p - ny), (0, f_p - f)))
    x2 = jnp.pad(x2, ((0, nx_p - nx), (0, 0)))
    y2 = jnp.pad(y2, ((0, 0), (0, ny_p - ny)))

    # bf16 hi/lo split (f32 parity on the MXU). y is pre-transposed once in the
    # wrapper so the kernel contraction is a plain [TM,TK]x[TK,TN] matmul.
    x_hi = xf.astype(jnp.bfloat16)
    x_lo = (xf - x_hi.astype(jnp.float32)).astype(jnp.bfloat16)
    yt = yf.T                                                # [F, Ny]
    y_hi = yt.astype(jnp.bfloat16)
    y_lo = (yt - y_hi.astype(jnp.float32)).astype(jnp.bfloat16)

    gm, gn, gk = nx_p // tm, ny_p // tn, f_p // tk

    # Make the larger of the two independent axes the leading "parallel" axis so
    # v7x's two TensorCores both get work (near-neutral on v5e/v6e).
    swap = gn > gm
    if swap:
        grid = (gn, gm, gk)
        bi = lambda a, b: b      # block index along Nx
        bj = lambda a, b: a      # block index along Ny
    else:
        grid = (gm, gn, gk)
        bi = lambda a, b: a
        bj = lambda a, b: b

    kernel = functools.partial(_gaussian_rbf_kernel, n_sigma=n_sigma, num_k=gk)

    # Accumulator scratch only needed when the K axis is actually tiled.
    scratch_shapes = [] if gk == 1 else [pltpu.VMEM((tm, tn), jnp.float32)]

    # CostEstimate with re-streaming: x (hi+lo) is read once per Ny tile,
    # y (hi+lo) once per Nx tile; 3 bf16 matmuls per output element pair.
    in_bytes = 2  # bf16
    flops = int(2 * nx_p * ny_p * (3 * f_p))
    bytes_accessed = int(
        2 * nx_p * f_p * in_bytes * gn
        + 2 * ny_p * f_p * in_bytes * gm
        + nx_p * ny_p * 4
        + (nx_p + ny_p) * 4)

    out = pl.pallas_call(
        kernel,
        out_shape=jax.ShapeDtypeStruct((nx_p, ny_p), jnp.float32),
        grid_spec=pltpu.PrefetchScalarGridSpec(
            num_scalar_prefetch=0,
            grid=grid,
            in_specs=[
                # neg_gamma scalars: whole array resident in SMEM.
                pl.BlockSpec(memory_space=pltpu.MemorySpace.SMEM),
                pl.BlockSpec((tm, tk), lambda a, b, k: (bi(a, b), k)),  # x hi
                pl.BlockSpec((tm, tk), lambda a, b, k: (bi(a, b), k)),  # x lo
                pl.BlockSpec((tk, tn), lambda a, b, k: (k, bj(a, b))),  # y hi (T)
                pl.BlockSpec((tk, tn), lambda a, b, k: (k, bj(a, b))),  # y lo (T)
                pl.BlockSpec((tm, 1), lambda a, b, k: (bi(a, b), 0)),   # ||x||^2
                pl.BlockSpec((1, tn), lambda a, b, k: (0, bj(a, b))),   # ||y||^2
            ],
            out_specs=pl.BlockSpec((tm, tn),
                                   lambda a, b, k: (bi(a, b), bj(a, b))),
            scratch_shapes=scratch_shapes,
        ),
        compiler_params=pltpu.CompilerParams(
            dimension_semantics=("parallel", "parallel", "arbitrary"),
            vmem_limit_bytes=32 * 1024 * 1024,
        ),
        cost_estimate=pl.CostEstimate(
            flops=flops,
            transcendentals=int(n_sigma * nx_p * ny_p),
            bytes_accessed=bytes_accessed,
        ),
    )(neg_gamma, x_hi, x_lo, y_hi, y_lo, x2, y2)

    return out[:nx, :ny]


def _reference(x, y, sigma):
    """Plain-JAX reference (exact pairwise squared distances, no MXU)."""
    xf = x.reshape(x.shape[0], -1).astype(jnp.float32)
    yf = y.reshape(y.shape[0], -1).astype(jnp.float32)
    d = jnp.sum((xf[:, None, :] - yf[None, :, :]) ** 2, axis=-1)
    d = jnp.maximum(d, 1e-30)
    g = 1.0 / (2.0 * jnp.asarray(sigma, jnp.float32).reshape(-1) ** 2)
    return jnp.mean(jnp.exp(-g[:, None, None] * d[None]), axis=0)


if __name__ == "__main__":
    key = jax.random.PRNGKey(0)
    kx, ky, kx2, ky2, kx3, ky3 = jax.random.split(key, 6)

    # Test 1: NCHW inputs, two bandwidths (F = 4*16*16 = 1024 -> K-grid of 2).
    x = jax.random.normal(kx, (8, 4, 16, 16), dtype=jnp.float32)
    y = jax.random.normal(ky, (8, 4, 16, 16), dtype=jnp.float32)
    sigma = jnp.array([16.0, 32.0], dtype=jnp.float32)
    out = jax.block_until_ready(gaussian_rbf(x, y, sigma))
    ref = _reference(x, y, sigma)
    assert out.shape == ref.shape
    assert jnp.allclose(out, ref, rtol=1e-4, atol=1e-4), \
        float(jnp.max(jnp.abs(out - ref)))

    # Test 2: ragged shapes exercising padding on Nx, Ny and F (K-grid of 1,
    # i.e. the no-scratch fast path).
    xb = jax.random.normal(kx2, (5, 3, 4, 4), dtype=jnp.float32)
    yb = jax.random.normal(ky2, (7, 3, 4, 4), dtype=jnp.float32)
    sigma_b = jnp.array([5.0], dtype=jnp.float32)
    out_b = jax.block_until_ready(gaussian_rbf(xb, yb, sigma_b))
    ref_b = _reference(xb, yb, sigma_b)
    assert out_b.shape == ref_b.shape
    assert jnp.allclose(out_b, ref_b, rtol=1e-4, atol=1e-4), \
        float(jnp.max(jnp.abs(out_b - ref_b)))

    # Test 3: small tile caps to exercise the multi-block grid, the K
    # accumulation path, and the grid-axis swap (Ny blocks > Nx blocks).
    xc = jax.random.normal(kx3, (20, 2, 8, 16), dtype=jnp.float32)   # F = 256
    yc = jax.random.normal(ky3, (300, 2, 8, 16), dtype=jnp.float32)
    sigma_c = jnp.array([8.0, 12.0], dtype=jnp.float32)
    out_c = jax.block_until_ready(
        gaussian_rbf(xc, yc, sigma_c, tm_max=16, tn_max=128, tk_max=128))
    ref_c = _reference(xc, yc, sigma_c)
    assert out_c.shape == ref_c.shape
    assert jnp.allclose(out_c, ref_c, rtol=1e-4, atol=1e-4), \
        float(jnp.max(jnp.abs(out_c - ref_c)))

    print("KERNEL_OK")
</pallas_src>

<mosaic_0001>
module attributes {stable_mosaic.version = 11 : i64} {
  func.func @_gaussian_rbf_kernel(%arg0: i32, %arg1: i32, %arg2: i32, %arg3: memref<2xf32, #tpu.memory_space<smem>>, %arg4: memref<16x512xbf16, #tpu.memory_space<vmem>>, %arg5: memref<16x512xbf16, #tpu.memory_space<vmem>>, %arg6: memref<512x128xbf16, #tpu.memory_space<vmem>>, %arg7: memref<512x128xbf16, #tpu.memory_space<vmem>>, %arg8: memref<16x1xf32, #tpu.memory_space<vmem>>, %arg9: memref<1x128xf32, #tpu.memory_space<vmem>>, %arg10: memref<16x128xf32, #tpu.memory_space<vmem>>, %arg11: memref<16x128xf32, #tpu.memory_space<vmem>>) attributes {dimension_semantics = [#tpu.dimension_semantics<parallel>, #tpu.dimension_semantics<parallel>, #tpu.dimension_semantics<arbitrary>], iteration_bounds = array<i64: 1, 1, 2>, scalar_prefetch = 0 : i64, scratch_operands = 1 : i64, tpu.core_type = #tpu.core_type<tc>, window_params = [{transform_indices = @transform_0, window_bounds = array<i64: 2>}, {transform_indices = @transform_1, window_bounds = array<i64: 16, 512>}, {transform_indices = @transform_2, window_bounds = array<i64: 16, 512>}, {transform_indices = @transform_3, window_bounds = array<i64: 512, 128>}, {transform_indices = @transform_4, window_bounds = array<i64: 512, 128>}, {transform_indices = @transform_5, window_bounds = array<i64: 16, 1>}, {transform_indices = @transform_6, window_bounds = array<i64: 1, 128>}, {transform_indices = @transform_7, window_bounds = array<i64: 16, 128>}]} {
    %c0 = arith.constant 0 : index
    %c0_0 = arith.constant 0 : index
    %0 = vector.load %arg4[%c0, %c0_0] : memref<16x512xbf16, #tpu.memory_space<vmem>>, vector<16x512xbf16>
    %c0_1 = arith.constant 0 : index
    %c0_2 = arith.constant 0 : index
    %1 = vector.load %arg6[%c0_1, %c0_2] : memref<512x128xbf16, #tpu.memory_space<vmem>>, vector<512x128xbf16>
    %cst = arith.constant dense<0.000000e+00> : vector<16x128xf32>
    %2 = tpu.matmul %0, %1, %cst {dimension_numbers = #tpu.dot_dimension_numbers<[1], [0], [0], [1], [0, 0, 1, 1], [], []>} : vector<16x512xbf16>, vector<512x128xbf16>, vector<16x128xf32> -> vector<16x128xf32>
    %c0_3 = arith.constant 0 : index
    %c0_4 = arith.constant 0 : index
    %3 = vector.load %arg4[%c0_3, %c0_4] : memref<16x512xbf16, #tpu.memory_space<vmem>>, vector<16x512xbf16>
    %c0_5 = arith.constant 0 : index
    %c0_6 = arith.constant 0 : index
    %4 = vector.load %arg7[%c0_5, %c0_6] : memref<512x128xbf16, #tpu.memory_space<vmem>>, vector<512x128xbf16>
    %cst_7 = arith.constant dense<0.000000e+00> : vector<16x128xf32>
    %5 = tpu.matmul %3, %4, %cst_7 {dimension_numbers = #tpu.dot_dimension_numbers<[1], [0], [0], [1], [0, 0, 1, 1], [], []>} : vector<16x512xbf16>, vector<512x128xbf16>, vector<16x128xf32> -> vector<16x128xf32>
    %6 = arith.addf %2, %5 : vector<16x128xf32>
    %c0_8 = arith.constant 0 : index
    %c0_9 = arith.constant 0 : index
    %7 = vector.load %arg5[%c0_8, %c0_9] : memref<16x512xbf16, #tpu.memory_space<vmem>>, vector<16x512xbf16>
    %c0_10 = arith.constant 0 : index
    %c0_11 = arith.constant 0 : index
    %8 = vector.load %arg6[%c0_10, %c0_11] : memref<512x128xbf16, #tpu.memory_space<vmem>>, vector<512x128xbf16>
    %cst_12 = arith.constant dense<0.000000e+00> : vector<16x128xf32>
    %9 = tpu.matmul %7, %8, %cst_12 {dimension_numbers = #tpu.dot_dimension_numbers<[1], [0], [0], [1], [0, 0, 1, 1], [], []>} : vector<16x512xbf16>, vector<512x128xbf16>, vector<16x128xf32> -> vector<16x128xf32>
    %10 = arith.addf %6, %9 : vector<16x128xf32>
    %c0_i32 = arith.constant 0 : i32
    %11 = arith.cmpi eq, %arg2, %c0_i32 : i32
    %12 = arith.extui %11 : i1 to i32
    %c0_i32_13 = arith.constant 0 : i32
    %13 = arith.cmpi ne, %12, %c0_i32_13 : i32
    scf.if %13 {
      %c0_18 = arith.constant 0 : index
      %c0_19 = arith.constant 0 : index
      %22 = vector.load %arg11[%c0_18, %c0_19] : memref<16x128xf32, #tpu.memory_space<vmem>>, vector<16x128xf32>
      tpu.vector_store %arg11[%c0_18, %c0_19], %10 {strides = array<i32>} : memref<16x128xf32, #tpu.memory_space<vmem>>, vector<16x128xf32>,
    } else {
    }
    %c0_i32_14 = arith.constant 0 : i32
    %14 = arith.cmpi sgt, %arg2, %c0_i32_14 : i32
    %c1_i32 = arith.constant 1 : i32
    %15 = arith.cmpi slt, %arg2, %c1_i32 : i32
    %16 = arith.andi %14, %15 : i1
    %17 = arith.extui %16 : i1 to i32
    %c0_i32_15 = arith.constant 0 : i32
    %18 = arith.cmpi ne, %17, %c0_i32_15 : i32
    scf.if %18 {
      %c0_18 = arith.constant 0 : index
      %c0_19 = arith.constant 0 : index
      %22 = vector.load %arg11[%c0_18, %c0_19] : memref<16x128xf32, #tpu.memory_space<vmem>>, vector<16x128xf32>
      %23 = arith.addf %22, %10 : vector<16x128xf32>
      %c0_20 = arith.constant 0 : index
      %c0_21 = arith.constant 0 : index
      %24 = vector.load %arg11[%c0_20, %c0_21] : memref<16x128xf32, #tpu.memory_space<vmem>>, vector<16x128xf32>
      tpu.vector_store %arg11[%c0_20, %c0_21], %23 {strides = array<i32>} : memref<16x128xf32, #tpu.memory_space<vmem>>, vector<16x128xf32>,
    } else {
    }
    %c1_i32_16 = arith.constant 1 : i32
    %19 = arith.cmpi eq, %arg2, %c1_i32_16 : i32
    %20 = arith.extui %19 : i1 to i32
    %c0_i32_17 = arith.constant 0 : i32
    %21 = arith.cmpi ne, %20, %c0_i32_17 : i32
    scf.if %21 {
      %c0_18 = arith.constant 0 : index
      %c0_19 = arith.constant 0 : index
      %22 = vector.load %arg11[%c0_18, %c0_19] : memref<16x128xf32, #tpu.memory_space<vmem>>, vector<16x128xf32>
      %23 = arith.addf %22, %10 : vector<16x128xf32>
      %c0_20 = arith.constant 0 : index
      %c0_21 = arith.constant 0 : index
      %24 = vector.load %arg8[%c0_20, %c0_21] : memref<16x1xf32, #tpu.memory_space<vmem>>, vector<16x1xf32>
      %c0_22 = arith.constant 0 : index
      %c0_23 = arith.constant 0 : index
      %25 = vector.load %arg9[%c0_22, %c0_23] : memref<1x128xf32, #tpu.memory_space<vmem>>, vector<1x128xf32>
      %26 = vector.broadcast %24 : vector<16x1xf32> to vector<16x128xf32>
      %27 = vector.broadcast %25 : vector<1x128xf32> to vector<16x128xf32>
      %28 = arith.addf %26, %27 : vector<16x128xf32>
      %cst_24 = arith.constant 2.000000e+00 : f32
      %29 = vector.broadcast %cst_24 : f32 to vector<16x128xf32>
      %30 = arith.mulf %29, %23 : vector<16x128xf32>
      %31 = arith.subf %28, %30 : vector<16x128xf32>
      %cst_25 = arith.constant 1.000000e-30 : f32
      %32 = vector.broadcast %cst_25 : f32 to vector<16x128xf32>
      %33 = arith.maximumf %31, %32 : vector<16x128xf32>
      %c0_26 = arith.constant 0 : index
      %34 = memref.load %arg3[%c0_26] : memref<2xf32, #tpu.memory_space<smem>>
      %35 = vector.broadcast %34 : f32 to vector<16x128xf32>
      %36 = arith.mulf %35, %33 : vector<16x128xf32>
      %37 = math.exp %36 : vector<16x128xf32>
      %c1 = arith.constant 1 : index
      %38 = memref.load %arg3[%c1] : memref<2xf32, #tpu.memory_space<smem>>
      %39 = vector.broadcast %38 : f32 to vector<16x128xf32>
      %40 = arith.mulf %39, %33 : vector<16x128xf32>
      %41 = math.exp %40 : vector<16x128xf32>
      %42 = arith.addf %37, %41 : vector<16x128xf32>
      %cst_27 = arith.constant 5.000000e-01 : f32
      %43 = vector.broadcast %cst_27 : f32 to vector<16x128xf32>
      %44 = arith.mulf %42, %43 : vector<16x128xf32>
      %c0_28 = arith.constant 0 : index
      %c0_29 = arith.constant 0 : index
      %45 = vector.load %arg10[%c0_28, %c0_29] : memref<16x128xf32, #tpu.memory_space<vmem>>, vector<16x128xf32>
      tpu.vector_store %arg10[%c0_28, %c0_29], %44 {strides = array<i32>} : memref<16x128xf32, #tpu.memory_space<vmem>>, vector<16x128xf32>,
    } else {
    }
    return
  }
  func.func @transform_0(%arg0: i32, %arg1: i32, %arg2: i32) -> i32 {
    %c0_i32 = arith.constant 0 : i32
    %c0_i32_0 = arith.constant 0 : i32
    return %c0_i32 : i32
  }
  func.func @transform_1(%arg0: i32, %arg1: i32, %arg2: i32) -> (i32, i32) {
    %c0_i32 = arith.constant 0 : i32
    return %arg0, %arg2 : i32, i32
  }
  func.func @transform_2(%arg0: i32, %arg1: i32, %arg2: i32) -> (i32, i32) {
    %c0_i32 = arith.constant 0 : i32
    return %arg0, %arg2 : i32, i32
  }
  func.func @transform_3(%arg0: i32, %arg1: i32, %arg2: i32) -> (i32, i32) {
    %c0_i32 = arith.constant 0 : i32
    return %arg2, %arg1 : i32, i32
  }
  func.func @transform_4(%arg0: i32, %arg1: i32, %arg2: i32) -> (i32, i32) {
    %c0_i32 = arith.constant 0 : i32
    return %arg2, %arg1 : i32, i32
  }
  func.func @transform_5(%arg0: i32, %arg1: i32, %arg2: i32) -> (i32, i32) {
    %c0_i32 = arith.constant 0 : i32
    %c0_i32_0 = arith.constant 0 : i32
    return %arg0, %c0_i32 : i32, i32
  }
  func.func @transform_6(%arg0: i32, %arg1: i32, %arg2: i32) -> (i32, i32) {
    %c0_i32 = arith.constant 0 : i32
    %c0_i32_0 = arith.constant 0 : i32
    return %c0_i32, %arg1 : i32, i32
  }
  func.func @transform_7(%arg0: i32, %arg1: i32, %arg2: i32) -> (i32, i32) {
    %c0_i32 = arith.constant 0 : i32
    return %arg0, %arg1 : i32, i32
  }
}

</mosaic_0001>

<llo_original>
// kernel: tpu_custom_call.1
$region0: #{tpu_custom_call.1}
  #allocation0 [shape = 'u32[]', space=smem, size = 0x4, offset = 0x4, fixed_abs, tag = 'smem constant byte address 0x4 - core index']
  #allocation1 [shape = 'u32[144,128]{1,0:T(1,128)}', space=vmem, size = 0x12000, scoped, tag = 'internal scratch']
  #allocation2 [shape = 'f32[16,128]{1,0:T(8,128)}', space=vmem, size = 0x2000, scoped, tag = 'scratch operand']
  %s0 = inlined_call_operand.vmem [shape: f32[2], index: 0, kind: input, shape index: {}]
  %s1 = inlined_call_operand.hbm [shape: bf16[16,1024], index: 1, kind: input, shape index: {}]
  %s2 = inlined_call_operand.hbm [shape: bf16[16,1024], index: 2, kind: input, shape index: {}]
  %s3 = inlined_call_operand.hbm [shape: bf16[1024,128], index: 3, kind: input, shape index: {}]
  %s4 = inlined_call_operand.hbm [shape: bf16[1024,128], index: 4, kind: input, shape index: {}]
  %s5 = inlined_call_operand.vmem [shape: f32[16,1], index: 5, kind: input, shape index: {}]
  %s6 = inlined_call_operand.vmem [shape: f32[1,128], index: 6, kind: input, shape index: {}]
  %s7 = inlined_call_operand.hbm [shape: f32[16,128], index: 7, kind: output, shape index: {}]
  %s8 = sld [smem:[#allocation0]]
  $region93: #{tpu_custom_call.1} parent=0
    _
  %s10 = ssub.s32 1, %s8
  %s11 = scalar_select 0, %s10, %s8
  $region1: #{tpu_custom_call.1} parent=0
    #allocation3 [shape = 'u8[512]{0}', space=smem, size = 0x200, scoped, tag = 'input window, operand 0, single buffered']
    #allocation4 [shape = 's32[2]{0}', space=sflag, size = 0x8, scoped, tag = 'scoped memory for tpu_custom_call.1']
    #allocation5 [shape = 's32[2]{0}', space=sflag, size = 0x8, scoped, tag = 'scoped memory for tpu_custom_call.1']
    #allocation6 [shape = 's32[2]{0}', space=sflag, size = 0x8, scoped, tag = 'scoped memory for tpu_custom_call.1']
    #allocation7 [shape = 'u8[32768]{0}', space=vmem, size = 0x8000, scoped, tag = 'input window, operand 1']
    #allocation8 [shape = 'u8[32768]{0}', space=vmem, size = 0x8000, scoped, tag = 'input window, operand 2']
    #allocation9 [shape = 's32[2]{0}', space=sflag, size = 0x8, scoped, tag = 'scoped memory for tpu_custom_call.1']
    #allocation10 [shape = 'u8[262144]{0}', space=vmem, size = 0x40000, scoped, tag = 'input window, operand 3']
    #allocation11 [shape = 'u8[262144]{0}', space=vmem, size = 0x40000, scoped, tag = 'input window, operand 4']
    #allocation12 [shape = 's32[2]{0}', space=sflag, size = 0x8, scoped, tag = 'scoped memory for tpu_custom_call.1']
    #allocation13 [shape = 'u8[8192]{0}', space=vmem, size = 0x2000, scoped, tag = 'output window, operand 0, single buffered']
    %12 = vsyncpa [#allocation6], 0
    %13 = vsyncpa [#allocation4], 0
    %s14 = scalar_lea.sflag [#allocation4], 1
    %15 = vsyncpa %s14, 0
    %16 = vsyncpa [#allocation9], 0
    %s17 = scalar_lea.sflag [#allocation9], 1
    %18 = vsyncpa %s17, 0
    %19 = vsyncpa [#allocation12], 0
    %s20 = scalar_lea.sflag [#allocation12], 1
    %21 = vsyncpa %s20, 0
    %22 = vsyncpa [#allocation5], 0
    loop: start=0, step=1, limit=4
    $region2: #{tpu_custom_call.1} parent=1 // loop_pre_header
      _
    $region3: #{tpu_custom_call.1} parent=1 // loop_header
      %s24 = sphi 0, %s28
      %p25 = scmp.ge.s32.totalorder %s24, 4
      %s31 = sphi 0, %s50
      %s32 = sphi 0, %s46
      %s33 = sphi 0, %s42
      %s34 = sphi 0, %s31
      %s35 = sphi 0, %s32
      %s36 = sphi 0, %s33
      %s37 = sphi 0, %s34
      %s38 = sphi 0, %s35
      %s39 = sphi 0, %s36
      %s51 = sphi 0, %s51
      %s53 = sphi 0, %s51
      %s54 = sphi 0, %s53
      %s68 = sphi 0, %s54
      %s76 = sphi 0, %s78
      %s79 = sphi 0, %s76
      %s80 = sphi 0, %s79
      %s96 = sphi 0, %s80
      %s104 = sphi 0, %s106
      %s107 = sphi 0, %s104
      %s108 = sphi 0, %s107
      %s124 = sphi 0, %s108
      %s132 = sphi 0, %s134
      %s135 = sphi 0, %s132
      %s136 = sphi 0, %s135
      %s152 = sphi 0, %s136
      %s160 = sphi 0, %s162
      %s163 = sphi 0, %s160
      %s164 = sphi 0, %s163
      %s180 = sphi 0, %s164
      %s186 = sphi 0, %s188
      %s189 = sphi 0, %s186
      %s190 = sphi 0, %s189
      %s206 = sphi 0, %s190
      %s212 = sphi 0, %s214
      %s215 = sphi 0, %s212
      %s216 = sphi 0, %s215
      %s232 = sphi 0, %s216
      %s240 = sphi 0, %s242
      %s243 = sphi 0, %s240
      %s244 = sphi 0, %s243
      %s260 = sphi 0, %s244
    $region4: #{tpu_custom_call.1} parent=1 // loop_header_branch
      %27 = sbr.rel (%p25) target = $region8
    $region5: #{tpu_custom_call.1} parent=1 // loop_body
      %s29 = ssub.s32 %s24, 1
      %s30 = ssub.s32 %s24, 2
      %s40 = sadd.s32 1, %s33
      %p41 = scmp.ge.s32.totalorder %s40, 2
      %s42 = scalar_select %p41, 0, %s40
      %s43 = sadd.s32 1, %s32
      %s44 = scalar_select %p41, %s43, %s32
      %p45 = scmp.ge.s32.totalorder %s44, 1
      %s46 = scalar_select %p45, 0, %s44
      %s47 = sadd.s32 1, %s31
      %s48 = scalar_select %p45, %s47, %s31
      %p49 = scmp.ge.s32.totalorder %s48, 1
      %s50 = scalar_select %p49, 0, %s48
      %s52 = sadd.s32 %s51, 1
      %p55 = scmp.eq.s32.totalorder %s24, 1
      %p56 = scmp.ne.s32.totalorder %s51, %s53
      %p57 = scmp.eq.s32.totalorder %s24, 0
      %p58 = por %p56, %p57
      %p59 = scmp.ne.s32.totalorder %s51, %s53
      %p60 = scmp.eq.s32.totalorder %s29, 1
      %p61 = por %p59, %p60
      %p62 = scmp.ne.s32.totalorder %s53, %s54
      %p63 = scmp.eq.s32.totalorder %s29, 0
      %p64 = por %p62, %p63
      %p65 = scmp.ne.s32.totalorder %s53, %s54
      %p66 = scmp.eq.s32.totalorder %s30, 1
      %p67 = por %p65, %p66
      %p69 = scmp.ne.s32.totalorder %s54, %s68
      %p70 = scmp.eq.s32.totalorder %s30, 0
      %p71 = por %p69, %p70
      %s72 = ssub.s32 %s31, %s50
      %s73 = ssub.s32 %s33, %s42
      %s74 = sor.u32 %s72, %s73
      %p75 = scmp.eq.s32.totalorder %s74, 0
      %s77 = sadd.s32 %s76, 1
      %s78 = scalar_select %p75, %s76, %s77
      %p81 = pneg %p75
      %p82 = scmp.eq.s32.totalorder %s24, 1
      %p83 = por %p81, %p82
      %p84 = scmp.ne.s32.totalorder %s76, %s79
      %p85 = scmp.eq.s32.totalorder %s24, 0
      %p86 = por %p84, %p85
      %p87 = scmp.ne.s32.totalorder %s76, %s79
      %p88 = scmp.eq.s32.totalorder %s29, 1
      %p89 = por %p87, %p88
      %p90 = scmp.ne.s32.totalorder %s79, %s80
      %p91 = scmp.eq.s32.totalorder %s29, 0
      %p92 = por %p90, %p91
      %p93 = scmp.ne.s32.totalorder %s79, %s80
      %p94 = scmp.eq.s32.totalorder %s30, 1
      %p95 = por %p93, %p94
      %p97 = scmp.ne.s32.totalorder %s80, %s96
      %p98 = scmp.eq.s32.totalorder %s30, 0
      %p99 = por %p97, %p98
      %s100 = ssub.s32 %s31, %s50
      %s101 = ssub.s32 %s33, %s42
      %s102 = sor.u32 %s100, %s101
      %p103 = scmp.eq.s32.totalorder %s102, 0
      %s105 = sadd.s32 %s104, 1
      %s106 = scalar_select %p103, %s104, %s105
      %p109 = pneg %p103
      %p110 = scmp.eq.s32.totalorder %s24, 1
      %p111 = por %p109, %p110
      %p112 = scmp.ne.s32.totalorder %s104, %s107
      %p113 = scmp.eq.s32.totalorder %s24, 0
      %p114 = por %p112, %p113
      %p115 = scmp.ne.s32.totalorder %s104, %s107
      %p116 = scmp.eq.s32.totalorder %s29, 1
      %p117 = por %p115, %p116
      %p118 = scmp.ne.s32.totalorder %s107, %s108
      %p119 = scmp.eq.s32.totalorder %s29, 0
      %p120 = por %p118, %p119
      %p121 = scmp.ne.s32.totalorder %s107, %s108
      %p122 = scmp.eq.s32.totalorder %s30, 1
      %p123 = por %p121, %p122
      %p125 = scmp.ne.s32.totalorder %s108, %s124
      %p126 = scmp.eq.s32.totalorder %s30, 0
      %p127 = por %p125, %p126
      %s128 = ssub.s32 %s33, %s42
      %s129 = ssub.s32 %s32, %s46
      %s130 = sor.u32 %s128, %s129
      %p131 = scmp.eq.s32.totalorder %s130, 0
      %s133 = sadd.s32 %s132, 1
      %s134 = scalar_select %p131, %s132, %s133
      %p137 = pneg %p131
      %p138 = scmp.eq.s32.totalorder %s24, 1
      %p139 = por %p137, %p138
      %p140 = scmp.ne.s32.totalorder %s132, %s135
      %p141 = scmp.eq.s32.totalorder %s24, 0
      %p142 = por %p140, %p141
      %p143 = scmp.ne.s32.totalorder %s132, %s135
      %p144 = scmp.eq.s32.totalorder %s29, 1
      %p145 = por %p143, %p144
      %p146 = scmp.ne.s32.totalorder %s135, %s136
      %p147 = scmp.eq.s32.totalorder %s29, 0
      %p148 = por %p146, %p147
      %p149 = scmp.ne.s32.totalorder %s135, %s136
      %p150 = scmp.eq.s32.totalorder %s30, 1
      %p151 = por %p149, %p150
      %p153 = scmp.ne.s32.totalorder %s136, %s152
      %p154 = scmp.eq.s32.totalorder %s30, 0
      %p155 = por %p153, %p154
      %s156 = ssub.s32 %s33, %s42
      %s157 = ssub.s32 %s32, %s46
      %s158 = sor.u32 %s156, %s157
      %p159 = scmp.eq.s32.totalorder %s158, 0
      %s161 = sadd.s32 %s160, 1
      %s162 = scalar_select %p159, %s160, %s161
      %p165 = pneg %p159
      %p166 = scmp.eq.s32.totalorder %s24, 1
      %p167 = por %p165, %p166
      %p168 = scmp.ne.s32.totalorder %s160, %s163
      %p169 = scmp.eq.s32.totalorder %s24, 0
      %p170 = por %p168, %p169
      %p171 = scmp.ne.s32.totalorder %s160, %s163
      %p172 = scmp.eq.s32.totalorder %s29, 1
      %p173 = por %p171, %p172
      %p174 = scmp.ne.s32.totalorder %s163, %s164
      %p175 = scmp.eq.s32.totalorder %s29, 0
      %p176 = por %p174, %p175
      %p177 = scmp.ne.s32.totalorder %s163, %s164
      %p178 = scmp.eq.s32.totalorder %s30, 1
      %p179 = por %p177, %p178
      %p181 = scmp.ne.s32.totalorder %s164, %s180
      %p182 = scmp.eq.s32.totalorder %s30, 0
      %p183 = por %p181, %p182
      %s184 = ssub.s32 %s31, %s50
      %p185 = scmp.eq.s32.totalorder %s184, 0
      %s187 = sadd.s32 %s186, 1
      %s188 = scalar_select %p185, %s186, %s187
      %p191 = pneg %p185
      %p192 = scmp.eq.s32.totalorder %s24, 1
      %p193 = por %p191, %p192
      %p194 = scmp.ne.s32.totalorder %s186, %s189
      %p195 = scmp.eq.s32.totalorder %s24, 0
      %p196 = por %p194, %p195
      %p197 = scmp.ne.s32.totalorder %s186, %s189
      %p198 = scmp.eq.s32.totalorder %s29, 1
      %p199 = por %p197, %p198
      %p200 = scmp.ne.s32.totalorder %s189, %s190
      %p201 = scmp.eq.s32.totalorder %s29, 0
      %p202 = por %p200, %p201
      %p203 = scmp.ne.s32.totalorder %s189, %s190
      %p204 = scmp.eq.s32.totalorder %s30, 1
      %p205 = por %p203, %p204
      %p207 = scmp.ne.s32.totalorder %s190, %s206
      %p208 = scmp.eq.s32.totalorder %s30, 0
      %p209 = por %p207, %p208
      %s210 = ssub.s32 %s32, %s46
      %p211 = scmp.eq.s32.totalorder %s210, 0
      %s213 = sadd.s32 %s212, 1
      %s214 = scalar_select %p211, %s212, %s213
      %p217 = pneg %p211
      %p218 = scmp.eq.s32.totalorder %s24, 1
      %p219 = por %p217, %p218
      %p220 = scmp.ne.s32.totalorder %s212, %s215
      %p221 = scmp.eq.s32.totalorder %s24, 0
      %p222 = por %p220, %p221
      %p223 = scmp.ne.s32.totalorder %s212, %s215
      %p224 = scmp.eq.s32.totalorder %s29, 1
      %p225 = por %p223, %p224
      %p226 = scmp.ne.s32.totalorder %s215, %s216
      %p227 = scmp.eq.s32.totalorder %s29, 0
      %p228 = por %p226, %p227
      %p229 = scmp.ne.s32.totalorder %s215, %s216
      %p230 = scmp.eq.s32.totalorder %s30, 1
      %p231 = por %p229, %p230
      %p233 = scmp.ne.s32.totalorder %s216, %s232
      %p234 = scmp.eq.s32.totalorder %s30, 0
      %p235 = por %p233, %p234
      %s236 = ssub.s32 %s31, %s50
      %s237 = ssub.s32 %s32, %s46
      %s238 = sor.u32 %s236, %s237
      %p239 = scmp.eq.s32.totalorder %s238, 0
      %s241 = sadd.s32 %s240, 1
      %s242 = scalar_select %p239, %s240, %s241
      %p245 = pneg %p239
      %p246 = scmp.eq.s32.totalorder %s24, 1
      %p247 = por %p245, %p246
      %p248 = scmp.ne.s32.totalorder %s240, %s243
      %p249 = scmp.eq.s32.totalorder %s24, 0
      %p250 = por %p248, %p249
      %p251 = scmp.ne.s32.totalorder %s240, %s243
      %p252 = scmp.eq.s32.totalorder %s29, 1
      %p253 = por %p251, %p252
      %p254 = scmp.ne.s32.totalorder %s243, %s244
      %p255 = scmp.eq.s32.totalorder %s29, 0
      %p256 = por %p254, %p255
      %p257 = scmp.ne.s32.totalorder %s243, %s244
      %p258 = scmp.eq.s32.totalorder %s30, 1
      %p259 = por %p257, %p258
      %p261 = scmp.ne.s32.totalorder %s244, %s260
      %p262 = scmp.eq.s32.totalorder %s30, 0
      %p263 = por %p261, %p262
      %p264 = scmp.le.s32.totalorder 1, %s24
      %p265 = scmp.lt.s32.totalorder %s24, 3
      %p266 = pnand %p264, %p265
      %p267 = pneg %p266
      // Predicated region
      $region9: #{tpu_custom_call.1} parent=5 // pred_check
        _
      $region10: #{tpu_custom_call.1} parent=5 // pred_check_branch
        %269 = sbr.rel (%p266) target = $region12
      $region11: #{tpu_custom_call.1} parent=5 // pred_region
        %s270 = ssub.s32 %s24, 1
        // Predicated region
        $region13: #{tpu_custom_call.1} parent=11 // pred_check
          %p271 = pneg %p64
        $region14: #{tpu_custom_call.1} parent=11 // pred_check_branch
          %273 = sbr.rel (%p271) target = $region16
        $region15: #{tpu_custom_call.1} parent=11 // pred_region
          %s275 = ssub.s32 16, 16
          %276 = vsyncadd [#allocation6], %s275
          %s278 = sshll.u32 %s0, 4
          %s279 = int_to_ptr.vmem [resolvable:$true] %s278
          %281 = dma.vmem_to_smem %s279, 16, [#allocation3], [#allocation6]
        $region16: #{tpu_custom_call.1} parent=11 // pred_fallthru
          _
        // Predicated region
        $region17: #{tpu_custom_call.1} parent=11 // pred_check
          %p282 = pneg %p202
        $region18: #{tpu_custom_call.1} parent=11 // pred_check_branch
          %284 = sbr.rel (%p282) target = $region20
        $region19: #{tpu_custom_call.1} parent=11 // pred_region
          %s285 = smul.u32 2, %s34
          %p286 = scmp.lt.s32.totalorder %s285, 1
          %s287 = scalar_select %p286, %s285, 1
          %s288 = smul.addr %s287, 8
          %s289 = scalar_lea.vmem %s5, %s288
          %s290 = smul.u32 2, %s34
        $region20: #{tpu_custom_call.1} parent=11 // pred_fallthru
          _
        // Predicated region
        $region21: #{tpu_custom_call.1} parent=11 // pred_check
          %p291 = pneg %p228
        $region22: #{tpu_custom_call.1} parent=11 // pred_check_branch
          %293 = sbr.rel (%p291) target = $region24
        $region23: #{tpu_custom_call.1} parent=11 // pred_region
          %p294 = scmp.lt.s32.totalorder %s35, 0
          %s295 = scalar_select %p294, %s35, 0
          %s296 = scalar_lea.vmem %s6, %s295
        $region24: #{tpu_custom_call.1} parent=11 // pred_fallthru
          _
      $region12: #{tpu_custom_call.1} parent=5 // pred_fallthru
        _
      %p297 = scmp.lt.s32.totalorder %s24, 2
      // Predicated region
      $region25: #{tpu_custom_call.1} parent=5 // pred_check
        %p298 = pneg %p297
      $region26: #{tpu_custom_call.1} parent=5 // pred_check_branch
        %300 = sbr.rel (%p298) target = $region28
      $region27: #{tpu_custom_call.1} parent=5 // pred_region
        // Predicated region
        $region29: #{tpu_custom_call.1} parent=27 // pred_check
          %p301 = pneg %p86
        $region30: #{tpu_custom_call.1} parent=27 // pred_check_branch
          %303 = sbr.rel (%p301) target = $region32
        $region31: #{tpu_custom_call.1} parent=27 // pred_region
          %s304 = sand.u32 %s76, 1
          %s305 = scalar_lea.sflag [#allocation4], %s304
          %s306 = sand.u32 %s76, 1
          %s307 = smul.addr %s306, 32
          %s308 = scalar_lea.vmem [#allocation7], %s307
          %s309 = smul.u32 2, %s31
          %s310 = smul.u32 4, %s33
          %s312 = ssub.s32 512, 512
          %313 = vsyncadd %s305, %s312
          %s314 = smul.addr %s309, 8
          %s315 = sadd.s32 %s310, %s314
          %s316 = smul.addr %s315, 64
          %s317 = scalar_lea.hbm %s1, %s316
          %s318 = sshll.u32 %s308, 4
          %s319 = int_to_ptr.vmem [resolvable:$true] %s318
          %324 = dma.hbm_to_vmem [thread:$0]  %s317, 512, %s319, %s305, 512, 256, 16
        $region32: #{tpu_custom_call.1} parent=27 // pred_fallthru
          _
        // Predicated region
        $region33: #{tpu_custom_call.1} parent=27 // pred_check
          %p325 = pneg %p114
        $region34: #{tpu_custom_call.1} parent=27 // pred_check_branch
          %327 = sbr.rel (%p325) target = $region36
        $region35: #{tpu_custom_call.1} parent=27 // pred_region
          %s328 = sand.u32 %s24, 1
          %s329 = scalar_lea.sflag [#allocation9], %s328
          %s330 = sand.u32 %s104, 1
          %s331 = smul.addr %s330, 32
          %s332 = scalar_lea.vmem [#allocation8], %s331
          %s333 = smul.u32 2, %s31
          %s334 = smul.u32 4, %s33
          %s336 = ssub.s32 512, 512
          %337 = vsyncadd %s329, %s336
          %s338 = smul.addr %s333, 8
          %s339 = sadd.s32 %s334, %s338
          %s340 = smul.addr %s339, 64
          %s341 = scalar_lea.hbm %s2, %s340
          %s342 = sshll.u32 %s332, 4
          %s343 = int_to_ptr.vmem [resolvable:$true] %s342
          %348 = dma.hbm_to_vmem [thread:$0]  %s341, 512, %s343, %s329, 512, 256, 16
        $region36: #{tpu_custom_call.1} parent=27 // pred_fallthru
          _
        // Predicated region
        $region37: #{tpu_custom_call.1} parent=27 // pred_check
          %p349 = pneg %p142
        $region38: #{tpu_custom_call.1} parent=27 // pred_check_branch
          %351 = sbr.rel (%p349) target = $region40
        $region39: #{tpu_custom_call.1} parent=27 // pred_region
          %s352 = sand.u32 %s24, 1
          %s353 = scalar_lea.sflag [#allocation9], %s352
          %s354 = sand.u32 %s132, 1
          %s355 = smul.addr %s354, 256
          %s356 = scalar_lea.vmem [#allocation10], %s355
          %s357 = smul.u32 64, %s33
          %s359 = ssub.s32 4096, 4096
          %360 = vsyncadd %s353, %s359
          %s361 = sadd.s32 %s32, %s357
          %s362 = smul.addr %s361, 64
          %s363 = scalar_lea.hbm %s3, %s362
          %s364 = sshll.u32 %s356, 4
          %s365 = int_to_ptr.vmem [resolvable:$true] %s364
          %370 = dma.hbm_to_vmem [thread:$0]  %s363, 4096, %s365, %s353, 64, 64, 4
        $region40: #{tpu_custom_call.1} parent=27 // pred_fallthru
          _
        // Predicated region
        $region41: #{tpu_custom_call.1} parent=27 // pred_check
          %p371 = pneg %p170
        $region42: #{tpu_custom_call.1} parent=27 // pred_check_branch
          %373 = sbr.rel (%p371) target = $region44
        $region43: #{tpu_custom_call.1} parent=27 // pred_region
          %s374 = sand.u32 %s160, 1
          %s375 = scalar_lea.sflag [#allocation12], %s374
          %s376 = sand.u32 %s160, 1
          %s377 = smul.addr %s376, 256
          %s378 = scalar_lea.vmem [#allocation11], %s377
          %s379 = smul.u32 64, %s33
          %s381 = ssub.s32 4096, 4096
          %382 = vsyncadd %s375, %s381
          %s383 = sadd.s32 %s32, %s379
          %s384 = smul.addr %s383, 64
          %s385 = scalar_lea.hbm %s4, %s384
          %s386 = sshll.u32 %s378, 4
          %s387 = int_to_ptr.vmem [resolvable:$true] %s386
          %392 = dma.hbm_to_vmem [thread:$0]  %s385, 4096, %s387, %s375, 64, 64, 4
        $region44: #{tpu_custom_call.1} parent=27 // pred_fallthru
          _
      $region28: #{tpu_custom_call.1} parent=5 // pred_fallthru
        _
      %p393 = scmp.le.s32.totalorder 1, %s24
      %p394 = scmp.lt.s32.totalorder %s24, 3
      %p395 = pnand %p393, %p394
      %p396 = pneg %p395
      // Predicated region
      $region45: #{tpu_custom_call.1} parent=5 // pred_check
        _
      $region46: #{tpu_custom_call.1} parent=5 // pred_check_branch
        %398 = sbr.rel (%p395) target = $region48
      $region47: #{tpu_custom_call.1} parent=5 // pred_region
        %s399 = ssub.s32 %s24, 1
        // Predicated region
        $region49: #{tpu_custom_call.1} parent=47 // pred_check
          %p400 = pneg %p64
        $region50: #{tpu_custom_call.1} parent=47 // pred_check_branch
          %402 = sbr.rel (%p400) target = $region52
        $region51: #{tpu_custom_call.1} parent=47 // pred_region
          %403 = dma.done [#allocation6], 16
        $region52: #{tpu_custom_call.1} parent=47 // pred_fallthru
          _
        %s404 = sand.u32 %s79, 1
        %s405 = scalar_lea.sflag [#allocation4], %s404
        %s406 = sand.u32 %s79, 1
        %s407 = smul.addr %s406, 32
        %s408 = scalar_lea.vmem [#allocation7], %s407
        // Predicated region
        $region53: #{tpu_custom_call.1} parent=47 // pred_check
          %p409 = pneg %p92
        $region54: #{tpu_custom_call.1} parent=47 // pred_check_branch
          %411 = sbr.rel (%p409) target = $region56
        $region55: #{tpu_custom_call.1} parent=47 // pred_region
          %412 = dma.done %s405, 512
        $region56: #{tpu_custom_call.1} parent=47 // pred_fallthru
          _
        %s413 = sand.u32 %s29, 1
        %s414 = scalar_lea.sflag [#allocation9], %s413
        %s415 = sand.u32 %s107, 1
        %s416 = smul.addr %s415, 32
        %s417 = scalar_lea.vmem [#allocation8], %s416
        // Predicated region
        $region57: #{tpu_custom_call.1} parent=47 // pred_check
          %p418 = pneg %p120
        $region58: #{tpu_custom_call.1} parent=47 // pred_check_branch
          %420 = sbr.rel (%p418) target = $region60
        $region59: #{tpu_custom_call.1} parent=47 // pred_region
          %421 = dma.done %s414, 512
        $region60: #{tpu_custom_call.1} parent=47 // pred_fallthru
          _
        %s422 = sand.u32 %s29, 1
        %s423 = scalar_lea.sflag [#allocation9], %s422
        %s424 = sand.u32 %s135, 1
        %s425 = smul.addr %s424, 256
        %s426 = scalar_lea.vmem [#allocation10], %s425
        // Predicated region
        $region61: #{tpu_custom_call.1} parent=47 // pred_check
          %p427 = pneg %p148
        $region62: #{tpu_custom_call.1} parent=47 // pred_check_branch
          %429 = sbr.rel (%p427) target = $region64
        $region63: #{tpu_custom_call.1} parent=47 // pred_region
          %430 = dma.done %s423, 4096
        $region64: #{tpu_custom_call.1} parent=47 // pred_fallthru
          _
        %s431 = sand.u32 %s163, 1
        %s432 = scalar_lea.sflag [#allocation12], %s431
        %s433 = sand.u32 %s163, 1
        %s434 = smul.addr %s433, 256
        %s435 = scalar_lea.vmem [#allocation11], %s434
        // Predicated region
        $region65: #{tpu_custom_call.1} parent=47 // pred_check
          %p436 = pneg %p176
        $region66: #{tpu_custom_call.1} parent=47 // pred_check_branch
          %438 = sbr.rel (%p436) target = $region68
        $region67: #{tpu_custom_call.1} parent=47 // pred_region
          %439 = dma.done %s432, 4096
        $region68: #{tpu_custom_call.1} parent=47 // pred_fallthru
          _
        %440 = sfence
        %p441 = pneg %p64
        %p442 = pneg %p61
        %s443 = sand.u32 %s79, 1
        %s444 = scalar_lea.sflag [#allocation4], %s443
        %s445 = sand.u32 %s79, 1
        %s446 = smul.addr %s445, 32
        %s447 = scalar_lea.vmem [#allocation7], %s446
        %p448 = pneg %p92
        %p449 = pneg %p89
        %s450 = sand.u32 %s29, 1
        %s451 = scalar_lea.sflag [#allocation9], %s450
        %s452 = sand.u32 %s107, 1
        %s453 = smul.addr %s452, 32
        %s454 = scalar_lea.vmem [#allocation8], %s453
        %p455 = pneg %p120
        %p456 = pneg %p117
        %s457 = sand.u32 %s29, 1
        %s458 = scalar_lea.sflag [#allocation9], %s457
        %s459 = sand.u32 %s135, 1
        %s460 = smul.addr %s459, 256
        %s461 = scalar_lea.vmem [#allocation10], %s460
        %p462 = pneg %p148
        %p463 = pneg %p145
        %s464 = sand.u32 %s163, 1
        %s465 = scalar_lea.sflag [#allocation12], %s464
        %s466 = sand.u32 %s163, 1
        %s467 = smul.addr %s466, 256
        %s468 = scalar_lea.vmem [#allocation11], %s467
        %p469 = pneg %p176
        %p470 = pneg %p173
        %s471 = smul.u32 2, %s34
        %p472 = scmp.lt.s32.totalorder %s471, 1
        %s473 = scalar_select %p472, %s471, 1
        %s474 = smul.addr %s473, 8
        %s475 = scalar_lea.vmem %s5, %s474
        %p476 = pneg %p202
        %p477 = pneg %p199
        %p478 = scmp.lt.s32.totalorder %s35, 0
        %s479 = scalar_select %p478, %s35, 0
        %s480 = scalar_lea.vmem %s6, %s479
        %p481 = pneg %p228
        %p482 = pneg %p225
        %p483 = pneg %p256
        %p484 = pneg %p253
        %s485 = smul.u32 2, %s34
        %s486 = smul.u32 4, %s36
        %s487 = smul.u32 2, %s34
        %s488 = smul.u32 4, %s36
        %s489 = smul.u32 64, %s36
        %s490 = smul.u32 64, %s36
        %s491 = smul.u32 2, %s34
        %p492 = scmp.lt.s32.totalorder %s491, 1
        %s493 = scalar_select %p492, %s491, 1
        %s494 = smul.addr %s493, 8
        %s495 = scalar_lea.vmem %s5, %s494
        %s496 = smul.u32 2, %s34
        %p497 = scmp.lt.s32.totalorder %s35, 0
        %s498 = scalar_select %p497, %s35, 0
        %s499 = scalar_lea.vmem %s6, %s498
        %s500 = smul.u32 2, %s34
        %v502 = vld [vmem:[%s408] sm:$0xff]
        %v503 = vld [vmem:[%s408 + $0x8] sm:$0xff]
        %v504 = vld [vmem:[%s408 + $0x10] sm:$0xff]
        %v505 = vld [vmem:[%s408 + $0x18] sm:$0xff]
        %v506 = vld [vmem:[%s426] sm:$0xf]
        %v507 = vld [vmem:[%s426 + $0x4] sm:$0xf]
        %v508 = vld [vmem:[%s426 + $0x8] sm:$0xf]
        %v509 = vld [vmem:[%s426 + $0xc] sm:$0xf]
        %v510 = vld [vmem:[%s426 + $0x10] sm:$0xf]
        %v511 = vld [vmem:[%s426 + $0x14] sm:$0xf]
        %v512 = vld [vmem:[%s426 + $0x18] sm:$0xf]
        %v513 = vld [vmem:[%s426 + $0x1c] sm:$0xf]
        %v514 = vld [vmem:[%s426 + $0x20] sm:$0xf]
        %v515 = vld [vmem:[%s426 + $0x24] sm:$0xf]
        %v516 = vld [vmem:[%s426 + $0x28] sm:$0xf]
        %v517 = vld [vmem:[%s426 + $0x2c] sm:$0xf]
        %v518 = vld [vmem:[%s426 + $0x30] sm:$0xf]
        %v519 = vld [vmem:[%s426 + $0x34] sm:$0xf]
        %v520 = vld [vmem:[%s426 + $0x38] sm:$0xf]
        %v521 = vld [vmem:[%s426 + $0x3c] sm:$0xf]
        %v522 = vld [vmem:[%s426 + $0x40] sm:$0xf]
        %v523 = vld [vmem:[%s426 + $0x44] sm:$0xf]
        %v524 = vld [vmem:[%s426 + $0x48] sm:$0xf]
        %v525 = vld [vmem:[%s426 + $0x4c] sm:$0xf]
        %v526 = vld [vmem:[%s426 + $0x50] sm:$0xf]
        %v527 = vld [vmem:[%s426 + $0x54] sm:$0xf]
        %v528 = vld [vmem:[%s426 + $0x58] sm:$0xf]
        %v529 = vld [vmem:[%s426 + $0x5c] sm:$0xf]
        %v530 = vld [vmem:[%s426 + $0x60] sm:$0xf]
        %v531 = vld [vmem:[%s426 + $0x64] sm:$0xf]
        %v532 = vld [vmem:[%s426 + $0x68] sm:$0xf]
        %v533 = vld [vmem:[%s426 + $0x6c] sm:$0xf]
        %v534 = vld [vmem:[%s426 + $0x70] sm:$0xf]
        %v535 = vld [vmem:[%s426 + $0x74] sm:$0xf]
        %v536 = vld [vmem:[%s426 + $0x78] sm:$0xf]
        %v537 = vld [vmem:[%s426 + $0x7c] sm:$0xf]
        %v538 = vld [vmem:[%s426 + $0x80] sm:$0xf]
        %v539 = vld [vmem:[%s426 + $0x84] sm:$0xf]
        %v540 = vld [vmem:[%s426 + $0x88] sm:$0xf]
        %v541 = vld [vmem:[%s426 + $0x8c] sm:$0xf]
        %v542 = vld [vmem:[%s426 + $0x90] sm:$0xf]
        %v543 = vld [vmem:[%s426 + $0x94] sm:$0xf]
        %v544 = vld [vmem:[%s426 + $0x98] sm:$0xf]
        %v545 = vld [vmem:[%s426 + $0x9c] sm:$0xf]
        %v546 = vld [vmem:[%s426 + $0xa0] sm:$0xf]
        %v547 = vld [vmem:[%s426 + $0xa4] sm:$0xf]
        %v548 = vld [vmem:[%s426 + $0xa8] sm:$0xf]
        %v549 = vld [vmem:[%s426 + $0xac] sm:$0xf]
        %v550 = vld [vmem:[%s426 + $0xb0] sm:$0xf]
        %v551 = vld [vmem:[%s426 + $0xb4] sm:$0xf]
        %v552 = vld [vmem:[%s426 + $0xb8] sm:$0xf]
        %v553 = vld [vmem:[%s426 + $0xbc] sm:$0xf]
        %v554 = vld [vmem:[%s426 + $0xc0] sm:$0xf]
        %v555 = vld [vmem:[%s426 + $0xc4] sm:$0xf]
        %v556 = vld [vmem:[%s426 + $0xc8] sm:$0xf]
        %v557 = vld [vmem:[%s426 + $0xcc] sm:$0xf]
        %v558 = vld [vmem:[%s426 + $0xd0] sm:$0xf]
        %v559 = vld [vmem:[%s426 + $0xd4] sm:$0xf]
        %v560 = vld [vmem:[%s426 + $0xd8] sm:$0xf]
        %v561 = vld [vmem:[%s426 + $0xdc] sm:$0xf]
        %v562 = vld [vmem:[%s426 + $0xe0] sm:$0xf]
        %v563 = vld [vmem:[%s426 + $0xe4] sm:$0xf]
        %v564 = vld [vmem:[%s426 + $0xe8] sm:$0xf]
        %v565 = vld [vmem:[%s426 + $0xec] sm:$0xf]
        %v566 = vld [vmem:[%s426 + $0xf0] sm:$0xf]
        %v567 = vld [vmem:[%s426 + $0xf4] sm:$0xf]
        %v568 = vld [vmem:[%s426 + $0xf8] sm:$0xf]
        %v569 = vld [vmem:[%s426 + $0xfc] sm:$0xf]
        %v570 = vld [vmem:[%s435] sm:$0xf]
        %v571 = vld [vmem:[%s435 + $0x4] sm:$0xf]
        %v572 = vld [vmem:[%s435 + $0x8] sm:$0xf]
        %v573 = vld [vmem:[%s435 + $0xc] sm:$0xf]
        %v574 = vld [vmem:[%s435 + $0x10] sm:$0xf]
        %v575 = vld [vmem:[%s435 + $0x14] sm:$0xf]
        %v576 = vld [vmem:[%s435 + $0x18] sm:$0xf]
        %v577 = vld [vmem:[%s435 + $0x1c] sm:$0xf]
        %v578 = vld [vmem:[%s435 + $0x20] sm:$0xf]
        %v579 = vld [vmem:[%s435 + $0x24] sm:$0xf]
        %v580 = vld [vmem:[%s435 + $0x28] sm:$0xf]
        %v581 = vld [vmem:[%s435 + $0x2c] sm:$0xf]
        %v582 = vld [vmem:[%s435 + $0x30] sm:$0xf]
        %v583 = vld [vmem:[%s435 + $0x34] sm:$0xf]
        %v584 = vld [vmem:[%s435 + $0x38] sm:$0xf]
        %v585 = vld [vmem:[%s435 + $0x3c] sm:$0xf]
        %v586 = vld [vmem:[%s435 + $0x40] sm:$0xf]
        %v587 = vld [vmem:[%s435 + $0x44] sm:$0xf]
        %v588 = vld [vmem:[%s435 + $0x48] sm:$0xf]
        %v589 = vld [vmem:[%s435 + $0x4c] sm:$0xf]
        %v590 = vld [vmem:[%s435 + $0x50] sm:$0xf]
        %v591 = vld [vmem:[%s435 + $0x54] sm:$0xf]
        %v592 = vld [vmem:[%s435 + $0x58] sm:$0xf]
        %v593 = vld [vmem:[%s435 + $0x5c] sm:$0xf]
        %v594 = vld [vmem:[%s435 + $0x60] sm:$0xf]
        %v595 = vld [vmem:[%s435 + $0x64] sm:$0xf]
        %v596 = vld [vmem:[%s435 + $0x68] sm:$0xf]
        %v597 = vld [vmem:[%s435 + $0x6c] sm:$0xf]
        %v598 = vld [vmem:[%s435 + $0x70] sm:$0xf]
        %v599 = vld [vmem:[%s435 + $0x74] sm:$0xf]
        %v600 = vld [vmem:[%s435 + $0x78] sm:$0xf]
        %v601 = vld [vmem:[%s435 + $0x7c] sm:$0xf]
        %v602 = vld [vmem:[%s435 + $0x80] sm:$0xf]
        %v603 = vld [vmem:[%s435 + $0x84] sm:$0xf]
        %v604 = vld [vmem:[%s435 + $0x88] sm:$0xf]
        %v605 = vld [vmem:[%s435 + $0x8c] sm:$0xf]
        %v606 = vld [vmem:[%s435 + $0x90] sm:$0xf]
        %v607 = vld [vmem:[%s435 + $0x94] sm:$0xf]
        %v608 = vld [vmem:[%s435 + $0x98] sm:$0xf]
        %v609 = vld [vmem:[%s435 + $0x9c] sm:$0xf]
        %v610 = vld [vmem:[%s435 + $0xa0] sm:$0xf]
        %v611 = vld [vmem:[%s435 + $0xa4] sm:$0xf]
        %v612 = vld [vmem:[%s435 + $0xa8] sm:$0xf]
        %v613 = vld [vmem:[%s435 + $0xac] sm:$0xf]
        %v614 = vld [vmem:[%s435 + $0xb0] sm:$0xf]
        %v615 = vld [vmem:[%s435 + $0xb4] sm:$0xf]
        %v616 = vld [vmem:[%s435 + $0xb8] sm:$0xf]
        %v617 = vld [vmem:[%s435 + $0xbc] sm:$0xf]
        %v618 = vld [vmem:[%s435 + $0xc0] sm:$0xf]
        %v619 = vld [vmem:[%s435 + $0xc4] sm:$0xf]
        %v620 = vld [vmem:[%s435 + $0xc8] sm:$0xf]
        %v621 = vld [vmem:[%s435 + $0xcc] sm:$0xf]
        %v622 = vld [vmem:[%s435 + $0xd0] sm:$0xf]
        %v623 = vld [vmem:[%s435 + $0xd4] sm:$0xf]
        %v624 = vld [vmem:[%s435 + $0xd8] sm:$0xf]
        %v625 = vld [vmem:[%s435 + $0xdc] sm:$0xf]
        %v626 = vld [vmem:[%s435 + $0xe0] sm:$0xf]
        %v627 = vld [vmem:[%s435 + $0xe4] sm:$0xf]
        %v628 = vld [vmem:[%s435 + $0xe8] sm:$0xf]
        %v629 = vld [vmem:[%s435 + $0xec] sm:$0xf]
        %v630 = vld [vmem:[%s435 + $0xf0] sm:$0xf]
        %v631 = vld [vmem:[%s435 + $0xf4] sm:$0xf]
        %v632 = vld [vmem:[%s435 + $0xf8] sm:$0xf]
        %v633 = vld [vmem:[%s435 + $0xfc] sm:$0xf]
        %v638 = vunpack.c.l.b16 %v502
        %v639 = vunpack.c.h.b16 %v502
        %v640 = vunpack.c.l.b16 %v503
        %v641 = vunpack.c.h.b16 %v503
        %v642 = vunpack.c.l.b16 %v504
        %v643 = vunpack.c.h.b16 %v504
        %v644 = vunpack.c.l.b16 %v505
        %v645 = vunpack.c.h.b16 %v505
        %v646 = vpack.c.b16 %v642, %v638
        %v647 = vpack.c.b16 %v643, %v639
        %v648 = vpack.c.b16 %v644, %v640
        %v649 = vpack.c.b16 %v645, %v641
        %v718 = vunpack.c.l.b16 %v570
        %v719 = vunpack.c.l.b16 %v571
        %v720 = vunpack.c.l.b16 %v572
        %v721 = vunpack.c.l.b16 %v573
        %v722 = vunpack.c.l.b16 %v574
        %v723 = vunpack.c.l.b16 %v575
        %v724 = vunpack.c.l.b16 %v576
        %v725 = vunpack.c.l.b16 %v577
        %v726 = vunpack.c.l.b16 %v578
        %v727 = vunpack.c.l.b16 %v579
        %v728 = vunpack.c.l.b16 %v580
        %v729 = vunpack.c.l.b16 %v581
        %v730 = vunpack.c.l.b16 %v582
        %v731 = vunpack.c.l.b16 %v583
        %v732 = vunpack.c.l.b16 %v584
        %v733 = vunpack.c.l.b16 %v585
        %v734 = vunpack.c.l.b16 %v586
        %v735 = vunpack.c.l.b16 %v587
        %v736 = vunpack.c.l.b16 %v588
        %v737 = vunpack.c.l.b16 %v589
        %v738 = vunpack.c.l.b16 %v590
        %v739 = vunpack.c.l.b16 %v591
        %v740 = vunpack.c.l.b16 %v592
        %v741 = vunpack.c.l.b16 %v593
        %v742 = vunpack.c.l.b16 %v594
        %v743 = vunpack.c.l.b16 %v595
        %v744 = vunpack.c.l.b16 %v596
        %v745 = vunpack.c.l.b16 %v597
        %v746 = vunpack.c.l.b16 %v598
        %v747 = vunpack.c.l.b16 %v599
        %v748 = vunpack.c.l.b16 %v600
        %v749 = vunpack.c.l.b16 %v601
        %v750 = vunpack.c.l.b16 %v602
        %v751 = vunpack.c.l.b16 %v603
        %v752 = vunpack.c.l.b16 %v604
        %v753 = vunpack.c.l.b16 %v605
        %v754 = vunpack.c.l.b16 %v606
        %v755 = vunpack.c.l.b16 %v607
        %v756 = vunpack.c.l.b16 %v608
        %v757 = vunpack.c.l.b16 %v609
        %v758 = vunpack.c.l.b16 %v610
        %v759 = vunpack.c.l.b16 %v611
        %v760 = vunpack.c.l.b16 %v612
        %v761 = vunpack.c.l.b16 %v613
        %v762 = vunpack.c.l.b16 %v614
        %v763 = vunpack.c.l.b16 %v615
        %v764 = vunpack.c.l.b16 %v616
        %v765 = vunpack.c.l.b16 %v617
        %v766 = vunpack.c.l.b16 %v618
        %v767 = vunpack.c.l.b16 %v619
        %v768 = vunpack.c.l.b16 %v620
        %v769 = vunpack.c.l.b16 %v621
        %v770 = vunpack.c.l.b16 %v622
        %v771 = vunpack.c.l.b16 %v623
        %v772 = vunpack.c.l.b16 %v624
        %v773 = vunpack.c.l.b16 %v625
        %v774 = vunpack.c.l.b16 %v626
        %v775 = vunpack.c.l.b16 %v627
        %v776 = vunpack.c.l.b16 %v628
        %v777 = vunpack.c.l.b16 %v629
        %v778 = vunpack.c.l.b16 %v630
        %v779 = vunpack.c.l.b16 %v631
        %v780 = vunpack.c.l.b16 %v632
        %v781 = vunpack.c.l.b16 %v633
        %v782 = vpack.c.b16 %v719, %v718
        %v783 = vpack.c.b16 %v721, %v720
        %v784 = vpack.c.b16 %v723, %v722
        %v785 = vpack.c.b16 %v725, %v724
        %v786 = vpack.c.b16 %v727, %v726
        %v787 = vpack.c.b16 %v729, %v728
        %v788 = vpack.c.b16 %v731, %v730
        %v789 = vpack.c.b16 %v733, %v732
        %v790 = vpack.c.b16 %v735, %v734
        %v791 = vpack.c.b16 %v737, %v736
        %v792 = vpack.c.b16 %v739, %v738
        %v793 = vpack.c.b16 %v741, %v740
        %v794 = vpack.c.b16 %v743, %v742
        %v795 = vpack.c.b16 %v745, %v744
        %v796 = vpack.c.b16 %v747, %v746
        %v797 = vpack.c.b16 %v749, %v748
        %v798 = vpack.c.b16 %v751, %v750
        %v799 = vpack.c.b16 %v753, %v752
        %v800 = vpack.c.b16 %v755, %v754
        %v801 = vpack.c.b16 %v757, %v756
        %v802 = vpack.c.b16 %v759, %v758
        %v803 = vpack.c.b16 %v761, %v760
        %v804 = vpack.c.b16 %v763, %v762
        %v805 = vpack.c.b16 %v765, %v764
        %v806 = vpack.c.b16 %v767, %v766
        %v807 = vpack.c.b16 %v769, %v768
        %v808 = vpack.c.b16 %v771, %v770
        %v809 = vpack.c.b16 %v773, %v772
        %v810 = vpack.c.b16 %v775, %v774
        %v811 = vpack.c.b16 %v777, %v776
        %v812 = vpack.c.b16 %v779, %v778
        %v813 = vpack.c.b16 %v781, %v780
        %846 = vmatprep.subr.bf16.mxu0 0
        %847 = vmatpush1.bf16.msra.mxu0 %v782
        %848 = vmatprep.subr.bf16.mxu0 0
        %849 = vmatpush1.bf16.msra.mxu0 %v783
        %850 = vmatprep.subr.bf16.mxu0 0
        %851 = vmatpush1.bf16.msra.mxu0 %v784
        %852 = vmatprep.subr.bf16.mxu0 0
        %853 = vmatpush1.bf16.msra.mxu0 %v785
        %854 = vmatprep.subr.bf16.mxu0 0
        %855 = vmatpush1.bf16.msra.mxu0 %v786
        %856 = vmatprep.subr.bf16.mxu0 0
        %857 = vmatpush1.bf16.msra.mxu0 %v787
        %858 = vmatprep.subr.bf16.mxu0 0
        %859 = vmatpush1.bf16.msra.mxu0 %v788
        %860 = vmatprep.subr.bf16.mxu0 0
        %861 = vmatpush1.bf16.msra.mxu0 %v789
        %862 = vmatprep.subr.bf16.mxu0 0
        %863 = vmatpush1.bf16.msra.mxu0 %v790
        %864 = vmatprep.subr.bf16.mxu0 0
        %865 = vmatpush1.bf16.msra.mxu0 %v791
        %866 = vmatprep.subr.bf16.mxu0 0
        %867 = vmatpush1.bf16.msra.mxu0 %v792
        %868 = vmatprep.subr.bf16.mxu0 0
        %869 = vmatpush1.bf16.msra.mxu0 %v793
        %870 = vmatprep.subr.bf16.mxu0 0
        %871 = vmatpush1.bf16.msra.mxu0 %v794
        %872 = vmatprep.subr.bf16.mxu0 0
        %873 = vmatpush1.bf16.msra.mxu0 %v795
        %874 = vmatprep.subr.bf16.mxu0 0
        %875 = vmatpush1.bf16.msra.mxu0 %v796
        %876 = vmatprep.subr.bf16.mxu0 0
        %877 = vmatpush1.bf16.msra.mxu0 %v797
        %878 = vmatprep.mubr.bf16.mxu0 %v647
        %879 = vmatmul.mubr.bf16.gmra.mrb[0].mxu0 %v646
        %v880 = vpop.f32.mrb[0].mxu0
        %v881 = vadd.f32 0.0, %v880
        %v882 = vpop.f32.mrb[0].mxu0
        %v883 = vpop.f32.mrb[0].mxu0
        %v884 = vadd.f32 0.0, %v883
        %v885 = vpop.f32.mrb[0].mxu0
        %886 = vdwg.mxu0
        %887 = vmatprep.subr.bf16.mxu0 0
        %888 = vmatpush1.bf16.msra.mxu0 %v798
        %889 = vmatprep.subr.bf16.mxu0 0
        %890 = vmatpush1.bf16.msra.mxu0 %v799
        %891 = vmatprep.subr.bf16.mxu0 0
        %892 = vmatpush1.bf16.msra.mxu0 %v800
        %893 = vmatprep.subr.bf16.mxu0 0
        %894 = vmatpush1.bf16.msra.mxu0 %v801
        %895 = vmatprep.subr.bf16.mxu0 0
        %896 = vmatpush1.bf16.msra.mxu0 %v802
        %897 = vmatprep.subr.bf16.mxu0 0
        %898 = vmatpush1.bf16.msra.mxu0 %v803
        %899 = vmatprep.subr.bf16.mxu0 0
        %900 = vmatpush1.bf16.msra.mxu0 %v804
        %901 = vmatprep.subr.bf16.mxu0 0
        %902 = vmatpush1.bf16.msra.mxu0 %v805
        %903 = vmatprep.subr.bf16.mxu0 0
        %904 = vmatpush1.bf16.msra.mxu0 %v806
        %905 = vmatprep.subr.bf16.mxu0 0
        %906 = vmatpush1.bf16.msra.mxu0 %v807
        %907 = vmatprep.subr.bf16.mxu0 0
        %908 = vmatpush1.bf16.msra.mxu0 %v808
        %909 = vmatprep.subr.bf16.mxu0 0
        %910 = vmatpush1.bf16.msra.mxu0 %v809
        %911 = vmatprep.subr.bf16.mxu0 0
        %912 = vmatpush1.bf16.msra.mxu0 %v810
        %913 = vmatprep.subr.bf16.mxu0 0
        %914 = vmatpush1.bf16.msra.mxu0 %v811
        %915 = vmatprep.subr.bf16.mxu0 0
        %916 = vmatpush1.bf16.msra.mxu0 %v812
        %917 = vmatprep.subr.bf16.mxu0 0
        %918 = vmatpush1.bf16.msra.mxu0 %v813
        %919 = vmatprep.mubr.bf16.mxu0 %v649
        %920 = vmatmul.mubr.bf16.gmra.mrb[0].mxu0 %v648
        %v921 = vpop.f32.mrb[0].mxu0
        %v922 = vadd.f32 %v881, %v921
        %v923 = vpop.f32.mrb[0].mxu0
        %v924 = vpop.f32.mrb[0].mxu0
        %v925 = vadd.f32 %v884, %v924
        %v926 = vpop.f32.mrb[0].mxu0
        %927 = vdwg.mxu0
        %v992 = vunpack.c.l.b16 %v506
        %v993 = vunpack.c.l.b16 %v507
        %v994 = vunpack.c.l.b16 %v508
        %v995 = vunpack.c.l.b16 %v509
        %v996 = vunpack.c.l.b16 %v510
        %v997 = vunpack.c.l.b16 %v511
        %v998 = vunpack.c.l.b16 %v512
        %v999 = vunpack.c.l.b16 %v513
        %v1000 = vunpack.c.l.b16 %v514
        %v1001 = vunpack.c.l.b16 %v515
        %v1002 = vunpack.c.l.b16 %v516
        %v1003 = vunpack.c.l.b16 %v517
        %v1004 = vunpack.c.l.b16 %v518
        %v1005 = vunpack.c.l.b16 %v519
        %v1006 = vunpack.c.l.b16 %v520
        %v1007 = vunpack.c.l.b16 %v521
        %v1008 = vunpack.c.l.b16 %v522
        %v1009 = vunpack.c.l.b16 %v523
        %v1010 = vunpack.c.l.b16 %v524
        %v1011 = vunpack.c.l.b16 %v525
        %v1012 = vunpack.c.l.b16 %v526
        %v1013 = vunpack.c.l.b16 %v527
        %v1014 = vunpack.c.l.b16 %v528
        %v1015 = vunpack.c.l.b16 %v529
        %v1016 = vunpack.c.l.b16 %v530
        %v1017 = vunpack.c.l.b16 %v531
        %v1018 = vunpack.c.l.b16 %v532
        %v1019 = vunpack.c.l.b16 %v533
        %v1020 = vunpack.c.l.b16 %v534
        %v1021 = vunpack.c.l.b16 %v535
        %v1022 = vunpack.c.l.b16 %v536
        %v1023 = vunpack.c.l.b16 %v537
        %v1024 = vunpack.c.l.b16 %v538
        %v1025 = vunpack.c.l.b16 %v539
        %v1026 = vunpack.c.l.b16 %v540
        %v1027 = vunpack.c.l.b16 %v541
        %v1028 = vunpack.c.l.b16 %v542
        %v1029 = vunpack.c.l.b16 %v543
        %v1030 = vunpack.c.l.b16 %v544
        %v1031 = vunpack.c.l.b16 %v545
        %v1032 = vunpack.c.l.b16 %v546
        %v1033 = vunpack.c.l.b16 %v547
        %v1034 = vunpack.c.l.b16 %v548
        %v1035 = vunpack.c.l.b16 %v549
        %v1036 = vunpack.c.l.b16 %v550
        %v1037 = vunpack.c.l.b16 %v551
        %v1038 = vunpack.c.l.b16 %v552
        %v1039 = vunpack.c.l.b16 %v553
        %v1040 = vunpack.c.l.b16 %v554
        %v1041 = vunpack.c.l.b16 %v555
        %v1042 = vunpack.c.l.b16 %v556
        %v1043 = vunpack.c.l.b16 %v557
        %v1044 = vunpack.c.l.b16 %v558
        %v1045 = vunpack.c.l.b16 %v559
        %v1046 = vunpack.c.l.b16 %v560
        %v1047 = vunpack.c.l.b16 %v561
        %v1048 = vunpack.c.l.b16 %v562
        %v1049 = vunpack.c.l.b16 %v563
        %v1050 = vunpack.c.l.b16 %v564
        %v1051 = vunpack.c.l.b16 %v565
        %v1052 = vunpack.c.l.b16 %v566
        %v1053 = vunpack.c.l.b16 %v567
        %v1054 = vunpack.c.l.b16 %v568
        %v1055 = vunpack.c.l.b16 %v569
        %v1056 = vpack.c.b16 %v993, %v992
        %v1057 = vpack.c.b16 %v995, %v994
        %v1058 = vpack.c.b16 %v997, %v996
        %v1059 = vpack.c.b16 %v999, %v998
        %v1060 = vpack.c.b16 %v1001, %v1000
        %v1061 = vpack.c.b16 %v1003, %v1002
        %v1062 = vpack.c.b16 %v1005, %v1004
        %v1063 = vpack.c.b16 %v1007, %v1006
        %v1064 = vpack.c.b16 %v1009, %v1008
        %v1065 = vpack.c.b16 %v1011, %v1010
        %v1066 = vpack.c.b16 %v1013, %v1012
        %v1067 = vpack.c.b16 %v1015, %v1014
        %v1068 = vpack.c.b16 %v1017, %v1016
        %v1069 = vpack.c.b16 %v1019, %v1018
        %v1070 = vpack.c.b16 %v1021, %v1020
        %v1071 = vpack.c.b16 %v1023, %v1022
        %v1072 = vpack.c.b16 %v1025, %v1024
        %v1073 = vpack.c.b16 %v1027, %v1026
        %v1074 = vpack.c.b16 %v1029, %v1028
        %v1075 = vpack.c.b16 %v1031, %v1030
        %v1076 = vpack.c.b16 %v1033, %v1032
        %v1077 = vpack.c.b16 %v1035, %v1034
        %v1078 = vpack.c.b16 %v1037, %v1036
        %v1079 = vpack.c.b16 %v1039, %v1038
        %v1080 = vpack.c.b16 %v1041, %v1040
        %v1081 = vpack.c.b16 %v1043, %v1042
        %v1082 = vpack.c.b16 %v1045, %v1044
        %v1083 = vpack.c.b16 %v1047, %v1046
        %v1084 = vpack.c.b16 %v1049, %v1048
        %v1085 = vpack.c.b16 %v1051, %v1050
        %v1086 = vpack.c.b16 %v1053, %v1052
        %v1087 = vpack.c.b16 %v1055, %v1054
        %1120 = vmatprep.subr.bf16.mxu0 0
        %1121 = vmatpush1.bf16.msra.mxu0 %v1056
        %1122 = vmatprep.subr.bf16.mxu0 0
        %1123 = vmatpush1.bf16.msra.mxu0 %v1057
        %1124 = vmatprep.subr.bf16.mxu0 0
        %1125 = vmatpush1.bf16.msra.mxu0 %v1058
        %1126 = vmatprep.subr.bf16.mxu0 0
        %1127 = vmatpush1.bf16.msra.mxu0 %v1059
        %1128 = vmatprep.subr.bf16.mxu0 0
        %1129 = vmatpush1.bf16.msra.mxu0 %v1060
        %1130 = vmatprep.subr.bf16.mxu0 0
        %1131 = vmatpush1.bf16.msra.mxu0 %v1061
        %1132 = vmatprep.subr.bf16.mxu0 0
        %1133 = vmatpush1.bf16.msra.mxu0 %v1062
        %1134 = vmatprep.subr.bf16.mxu0 0
        %1135 = vmatpush1.bf16.msra.mxu0 %v1063
        %1136 = vmatprep.subr.bf16.mxu0 0
        %1137 = vmatpush1.bf16.msra.mxu0 %v1064
        %1138 = vmatprep.subr.bf16.mxu0 0
        %1139 = vmatpush1.bf16.msra.mxu0 %v1065
        %1140 = vmatprep.subr.bf16.mxu0 0
        %1141 = vmatpush1.bf16.msra.mxu0 %v1066
        %1142 = vmatprep.subr.bf16.mxu0 0
        %1143 = vmatpush1.bf16.msra.mxu0 %v1067
        %1144 = vmatprep.subr.bf16.mxu0 0
        %1145 = vmatpush1.bf16.msra.mxu0 %v1068
        %1146 = vmatprep.subr.bf16.mxu0 0
        %1147 = vmatpush1.bf16.msra.mxu0 %v1069
        %1148 = vmatprep.subr.bf16.mxu0 0
        %1149 = vmatpush1.bf16.msra.mxu0 %v1070
        %1150 = vmatprep.subr.bf16.mxu0 0
        %1151 = vmatpush1.bf16.msra.mxu0 %v1071
        %1152 = vmatprep.mubr.bf16.mxu0 %v647
        %1153 = vmatmul.mubr.bf16.gmra.mrb[0].mxu0 %v646
        %v1154 = vpop.f32.mrb[0].mxu0
        %v1155 = vadd.f32 %v922, %v1154
        %v1156 = vpop.f32.mrb[0].mxu0
        %v1157 = vpop.f32.mrb[0].mxu0
        %v1158 = vadd.f32 %v925, %v1157
        %v1159 = vpop.f32.mrb[0].mxu0
        %1160 = vdwg.mxu0
        %1161 = vmatprep.subr.bf16.mxu0 0
        %1162 = vmatpush1.bf16.msra.mxu0 %v1072
        %1163 = vmatprep.subr.bf16.mxu0 0
        %1164 = vmatpush1.bf16.msra.mxu0 %v1073
        %1165 = vmatprep.subr.bf16.mxu0 0
        %1166 = vmatpush1.bf16.msra.mxu0 %v1074
        %1167 = vmatprep.subr.bf16.mxu0 0
        %1168 = vmatpush1.bf16.msra.mxu0 %v1075
        %1169 = vmatprep.subr.bf16.mxu0 0
        %1170 = vmatpush1.bf16.msra.mxu0 %v1076
        %1171 = vmatprep.subr.bf16.mxu0 0
        %1172 = vmatpush1.bf16.msra.mxu0 %v1077
        %1173 = vmatprep.subr.bf16.mxu0 0
        %1174 = vmatpush1.bf16.msra.mxu0 %v1078
        %1175 = vmatprep.subr.bf16.mxu0 0
        %1176 = vmatpush1.bf16.msra.mxu0 %v1079
        %1177 = vmatprep.subr.bf16.mxu0 0
        %1178 = vmatpush1.bf16.msra.mxu0 %v1080
        %1179 = vmatprep.subr.bf16.mxu0 0
        %1180 = vmatpush1.bf16.msra.mxu0 %v1081
        %1181 = vmatprep.subr.bf16.mxu0 0
        %1182 = vmatpush1.bf16.msra.mxu0 %v1082
        %1183 = vmatprep.subr.bf16.mxu0 0
        %1184 = vmatpush1.bf16.msra.mxu0 %v1083
        %1185 = vmatprep.subr.bf16.mxu0 0
        %1186 = vmatpush1.bf16.msra.mxu0 %v1084
        %1187 = vmatprep.subr.bf16.mxu0 0
        %1188 = vmatpush1.bf16.msra.mxu0 %v1085
        %1189 = vmatprep.subr.bf16.mxu0 0
        %1190 = vmatpush1.bf16.msra.mxu0 %v1086
        %1191 = vmatprep.subr.bf16.mxu0 0
        %1192 = vmatpush1.bf16.msra.mxu0 %v1087
        %1193 = vmatprep.mubr.bf16.mxu0 %v649
        %1194 = vmatmul.mubr.bf16.gmra.mrb[0].mxu0 %v648
        %v1195 = vpop.f32.mrb[0].mxu0
        %v1196 = vadd.f32 %v1155, %v1195
        %v1197 = vpop.f32.mrb[0].mxu0
        %v1198 = vpop.f32.mrb[0].mxu0
        %v1199 = vadd.f32 %v1158, %v1198
        %v1200 = vpop.f32.mrb[0].mxu0
        %1201 = vdwg.mxu0
        %v1202 = vld [vmem:[%s417] sm:$0xff]
        %v1203 = vld [vmem:[%s417 + $0x8] sm:$0xff]
        %v1204 = vld [vmem:[%s417 + $0x10] sm:$0xff]
        %v1205 = vld [vmem:[%s417 + $0x18] sm:$0xff]
        %v1210 = vunpack.c.l.b16 %v1202
        %v1211 = vunpack.c.h.b16 %v1202
        %v1212 = vunpack.c.l.b16 %v1203
        %v1213 = vunpack.c.h.b16 %v1203
        %v1214 = vunpack.c.l.b16 %v1204
        %v1215 = vunpack.c.h.b16 %v1204
        %v1216 = vunpack.c.l.b16 %v1205
        %v1217 = vunpack.c.h.b16 %v1205
        %v1218 = vpack.c.b16 %v1214, %v1210
        %v1219 = vpack.c.b16 %v1215, %v1211
        %v1220 = vpack.c.b16 %v1216, %v1212
        %v1221 = vpack.c.b16 %v1217, %v1213
        %1226 = vmatprep.subr.bf16.mxu0 0
        %1227 = vmatpush1.bf16.msra.mxu0 %v1056
        %1228 = vmatprep.subr.bf16.mxu0 0
        %1229 = vmatpush1.bf16.msra.mxu0 %v1057
        %1230 = vmatprep.subr.bf16.mxu0 0
        %1231 = vmatpush1.bf16.msra.mxu0 %v1058
        %1232 = vmatprep.subr.bf16.mxu0 0
        %1233 = vmatpush1.bf16.msra.mxu0 %v1059
        %1234 = vmatprep.subr.bf16.mxu0 0
        %1235 = vmatpush1.bf16.msra.mxu0 %v1060
        %1236 = vmatprep.subr.bf16.mxu0 0
        %1237 = vmatpush1.bf16.msra.mxu0 %v1061
        %1238 = vmatprep.subr.bf16.mxu0 0
        %1239 = vmatpush1.bf16.msra.mxu0 %v1062
        %1240 = vmatprep.subr.bf16.mxu0 0
        %1241 = vmatpush1.bf16.msra.mxu0 %v1063
        %1242 = vmatprep.subr.bf16.mxu0 0
        %1243 = vmatpush1.bf16.msra.mxu0 %v1064
        %1244 = vmatprep.subr.bf16.mxu0 0
        %1245 = vmatpush1.bf16.msra.mxu0 %v1065
        %1246 = vmatprep.subr.bf16.mxu0 0
        %1247 = vmatpush1.bf16.msra.mxu0 %v1066
        %1248 = vmatprep.subr.bf16.mxu0 0
        %1249 = vmatpush1.bf16.msra.mxu0 %v1067
        %1250 = vmatprep.subr.bf16.mxu0 0
        %1251 = vmatpush1.bf16.msra.mxu0 %v1068
        %1252 = vmatprep.subr.bf16.mxu0 0
        %1253 = vmatpush1.bf16.msra.mxu0 %v1069
        %1254 = vmatprep.subr.bf16.mxu0 0
        %1255 = vmatpush1.bf16.msra.mxu0 %v1070
        %1256 = vmatprep.subr.bf16.mxu0 0
        %1257 = vmatpush1.bf16.msra.mxu0 %v1071
        %1258 = vmatprep.mubr.bf16.mxu0 %v1219
        %1259 = vmatmul.mubr.bf16.gmra.mrb[0].mxu0 %v1218
        %v1260 = vpop.f32.mrb[0].mxu0
        %v1261 = vadd.f32 0.0, %v1260
        %v1262 = vpop.f32.mrb[0].mxu0
        %v1263 = vpop.f32.mrb[0].mxu0
        %v1264 = vadd.f32 0.0, %v1263
        %v1265 = vpop.f32.mrb[0].mxu0
        %1266 = vdwg.mxu0
        %1267 = vmatprep.subr.bf16.mxu0 0
        %1268 = vmatpush1.bf16.msra.mxu0 %v1072
        %1269 = vmatprep.subr.bf16.mxu0 0
        %1270 = vmatpush1.bf16.msra.mxu0 %v1073
        %1271 = vmatprep.subr.bf16.mxu0 0
        %1272 = vmatpush1.bf16.msra.mxu0 %v1074
        %1273 = vmatprep.subr.bf16.mxu0 0
        %1274 = vmatpush1.bf16.msra.mxu0 %v1075
        %1275 = vmatprep.subr.bf16.mxu0 0
        %1276 = vmatpush1.bf16.msra.mxu0 %v1076
        %1277 = vmatprep.subr.bf16.mxu0 0
        %1278 = vmatpush1.bf16.msra.mxu0 %v1077
        %1279 = vmatprep.subr.bf16.mxu0 0
        %1280 = vmatpush1.bf16.msra.mxu0 %v1078
        %1281 = vmatprep.subr.bf16.mxu0 0
        %1282 = vmatpush1.bf16.msra.mxu0 %v1079
        %1283 = vmatprep.subr.bf16.mxu0 0
        %1284 = vmatpush1.bf16.msra.mxu0 %v1080
        %1285 = vmatprep.subr.bf16.mxu0 0
        %1286 = vmatpush1.bf16.msra.mxu0 %v1081
        %1287 = vmatprep.subr.bf16.mxu0 0
        %1288 = vmatpush1.bf16.msra.mxu0 %v1082
        %1289 = vmatprep.subr.bf16.mxu0 0
        %1290 = vmatpush1.bf16.msra.mxu0 %v1083
        %1291 = vmatprep.subr.bf16.mxu0 0
        %1292 = vmatpush1.bf16.msra.mxu0 %v1084
        %1293 = vmatprep.subr.bf16.mxu0 0
        %1294 = vmatpush1.bf16.msra.mxu0 %v1085
        %1295 = vmatprep.subr.bf16.mxu0 0
        %1296 = vmatpush1.bf16.msra.mxu0 %v1086
        %1297 = vmatprep.subr.bf16.mxu0 0
        %1298 = vmatpush1.bf16.msra.mxu0 %v1087
        %1299 = vmatprep.mubr.bf16.mxu0 %v1221
        %1300 = vmatmul.mubr.bf16.gmra.mrb[0].mxu0 %v1220
        %v1301 = vpop.f32.mrb[0].mxu0
        %v1302 = vadd.f32 %v1261, %v1301
        %v1303 = vpop.f32.mrb[0].mxu0
        %v1304 = vpop.f32.mrb[0].mxu0
        %v1305 = vadd.f32 %v1264, %v1304
        %v1306 = vpop.f32.mrb[0].mxu0
        %1307 = vdwg.mxu0
        %v1308 = vadd.f32 %v1196, %v1302
        %v1309 = vadd.f32 %v1199, %v1305
        %p1310 = scmp.eq.s32.totalorder %s36, 0
        // Predicated region
        $region69: #{tpu_custom_call.1} parent=47 // pred_check
          %p1311 = pneg %p1310
        $region70: #{tpu_custom_call.1} parent=47 // pred_check_branch
          %1313 = sbr.rel (%p1311) target = $region72
        $region71: #{tpu_custom_call.1} parent=47 // pred_region
          %1314 = vst [vmem:[#allocation2] sm:$0xff] %v1308
          %1315 = vst [vmem:[#allocation2 + $0x8] sm:$0xff] %v1309
        $region72: #{tpu_custom_call.1} parent=47 // pred_fallthru
          _
        %p1316 = scmp.gt.s32.totalorder %s36, 0
        %p1317 = scmp.lt.s32.totalorder %s36, 1
        %p1318 = pnand %p1316, %p1317
        %p1319 = pneg %p1318
        // Predicated region
        $region73: #{tpu_custom_call.1} parent=47 // pred_check
          _
        $region74: #{tpu_custom_call.1} parent=47 // pred_check_branch
          %1321 = sbr.rel (%p1318) target = $region76
        $region75: #{tpu_custom_call.1} parent=47 // pred_region
          %v1322 = vld [vmem:[#allocation2] sm:$0xff]
          %v1323 = vld [vmem:[#allocation2 + $0x8] sm:$0xff]
          %v1324 = vadd.f32 %v1322, %v1308
          %v1325 = vadd.f32 %v1323, %v1309
          %1326 = vst [vmem:[#allocation2] sm:$0xff] %v1324
          %1327 = vst [vmem:[#allocation2 + $0x8] sm:$0xff] %v1325
        $region76: #{tpu_custom_call.1} parent=47 // pred_fallthru
          _
        %p1328 = scmp.eq.s32.totalorder %s36, 1
        // Predicated region
        $region77: #{tpu_custom_call.1} parent=47 // pred_check
          %p1329 = pneg %p1328
        $region78: #{tpu_custom_call.1} parent=47 // pred_check_branch
          %1331 = sbr.rel (%p1329) target = $region80
        $region79: #{tpu_custom_call.1} parent=47 // pred_region
          %v1332 = vld [vmem:[#allocation2] sm:$0xff]
          %v1333 = vld [vmem:[#allocation2 + $0x8] sm:$0xff]
          %v1334 = vadd.f32 %v1332, %v1308
          %v1335 = vadd.f32 %v1333, %v1309
          %v1336 = vld [vmem:[%s495] sm:$0xff]
          %v1337 = vld [vmem:[%s495 + $0x8] sm:$0xff]
          %v1338 = vld [vmem:[%s499] sm:$0x1]
          %1340 = vset.pattern.permute.xlu0 0
          %1341 = vperm.xlu0 %1340, %v1336
          %v1342 = vpop.permute.xlu0 %1341
          %1345 = vset.pattern.permute.xlu0 0
          %1346 = vperm.xlu0 %1345, %v1337
          %v1347 = vpop.permute.xlu0 %1346
          %v1350 = vlaneseq
          %v1351 = vshrl.u32 %v1350, 7
          %v1352 = vsub.s32 0, %v1351
          %v1353 = vrot.slane %v1338, %v1352
          %v1355 = vadd.f32 %v1342, %v1353
          %v1356 = vadd.f32 %v1347, %v1353
          %v1357 = vmul.f32 %v1334, 2.0
          %v1358 = vmul.f32 %v1335, 2.0
          %v1359 = vsub.f32 %v1355, %v1357
          %v1360 = vsub.f32 %v1356, %v1358
          %v1361 = vmax.f32 %v1359, 1e-30
          %v1362 = vmax.f32 %v1360, 1e-30
          %s1363 = sld [smem:[#allocation3]]
          %v1364 = vstv %s1363
          %v1365 = vmul.f32 %v1364, %v1361
          %v1366 = vmul.f32 %v1364, %v1362
          %v1367 = vmul.f32 %v1365, 1.442695
          %v1368 = vpow.pop %v1367
          %v1369 = vmul.f32 %v1366, 1.442695
          %v1370 = vpow.pop %v1369
          %s1371 = sld [smem:[#allocation3 + $0x1]]
          %v1372 = vstv %s1371
          %v1373 = vmul.f32 %v1372, %v1361
          %v1374 = vmul.f32 %v1372, %v1362
          %v1375 = vmul.f32 %v1373, 1.442695
          %v1376 = vpow.pop %v1375
          %v1377 = vmul.f32 %v1374, 1.442695
          %v1378 = vpow.pop %v1377
          %v1379 = vadd.f32 %v1368, %v1376
          %v1380 = vadd.f32 %v1370, %v1378
          %v1381 = vmul.f32 %v1379, 0.5
          %v1382 = vmul.f32 %v1380, 0.5
          %1383 = vst [vmem:[#allocation13] sm:$0xff] %v1381
          %1384 = vst [vmem:[#allocation13 + $0x8] sm:$0xff] %v1382
        $region80: #{tpu_custom_call.1} parent=47 // pred_fallthru
          _
        // Predicated region
        $region81: #{tpu_custom_call.1} parent=47 // pred_check
          %p1385 = pneg %p253
        $region82: #{tpu_custom_call.1} parent=47 // pred_check_branch
          %1387 = sbr.rel (%p1385) target = $region84
        $region83: #{tpu_custom_call.1} parent=47 // pred_region
          %s1388 = smul.u32 2, %s34
          %s1390 = ssub.s32 256, 256
          %1391 = vsyncadd [#allocation5], %s1390
          %s1392 = sadd.s32 %s35, %s1388
          %s1393 = smul.addr %s1392, 128
          %s1394 = scalar_lea.hbm %s7, %s1393
          %s1395 = sshll.u32 [#allocation13], 4
          %s1396 = int_to_ptr.vmem [resolvable:$true] %s1395
          %1401 = dma.vmem_to_hbm [thread:$0]  %s1396, 256, %s1394, [#allocation5], 128, 128, 8
        $region84: #{tpu_custom_call.1} parent=47 // pred_fallthru
          _
        // Predicated region
        $region85: #{tpu_custom_call.1} parent=47 // pred_check
          %p1402 = pneg %p253
        $region86: #{tpu_custom_call.1} parent=47 // pred_check_branch
          %1404 = sbr.rel (%p1402) target = $region88
        $region87: #{tpu_custom_call.1} parent=47 // pred_region
          %1405 = dma.done [#allocation5], 256
        $region88: #{tpu_custom_call.1} parent=47 // pred_fallthru
          _
      $region48: #{tpu_custom_call.1} parent=5 // pred_fallthru
        _
      %p1406 = scmp.le.s32.totalorder 2, %s24
      // Predicated region
      $region89: #{tpu_custom_call.1} parent=5 // pred_check
        %p1407 = pneg %p1406
      $region90: #{tpu_custom_call.1} parent=5 // pred_check_branch
        %1409 = sbr.rel (%p1407) target = $region92
      $region91: #{tpu_custom_call.1} parent=5 // pred_region
        %s1410 = ssub.s32 %s24, 2
      $region92: #{tpu_custom_call.1} parent=5 // pred_fallthru
        _
    $region6: #{tpu_custom_call.1} parent=1 // loop_footer
      %s28 = sadd.s32 1, %s24
    $region7: #{tpu_custom_call.1} parent=1 // loop_footer_branch
      %23 = sbr.rel target = $region3
    $region8: #{tpu_custom_call.1} parent=1 // loop_exit
      _
    %1411 = vsyncpa [#allocation4], 1
    %s1412 = scalar_lea.sflag [#allocation4], 1
    %1413 = vsyncpa %s1412, 1
    %1414 = vsyncpa [#allocation9], 1
    %s1415 = scalar_lea.sflag [#allocation9], 1
    %1416 = vsyncpa %s1415, 1
    %1417 = vsyncpa [#allocation12], 1
    %s1418 = scalar_lea.sflag [#allocation12], 1
    %1419 = vsyncpa %s1418, 1
    %1420 = vsyncpa [#allocation5], 1
    %s1421 = scalar_lea.sflag [#allocation5], 1
    %1422 = vsyncpa %s1421, 1
    %1423 = vsyncpa [#allocation6], 1
    %s1424 = scalar_lea.sflag [#allocation6], 1
    %1425 = vsyncpa %s1424, 1

</llo_original>
